<compile_context>
chip_gen: v7x
topology: tpu7x:2x2x1
jax: 0.10.0
libtpu: 0.0.40
codegen_flags: <defaults>
</compile_context>

<pallas_src>
import functools

import jax
import jax.numpy as jnp
from jax.experimental import pallas as pl
from jax.experimental.pallas import tpu as pltpu

_LANE = 128
_SUBLANE_BF16 = 16     # bf16 sublane-packing granularity
_ROW_TILE_CAP = 1024   # comfortable at DETR-sized feature dims on all gens


def _cdiv(a, b):
    return (a + b - 1) // b


def _round_up(x, m):
    return ((x + m - 1) // m) * m


def _mlp_fused_kernel(x_ref, *refs, num_layers):
    """Fused MLP over one (tm, K) row-tile.

    refs = (w0, b0, w1, b1, ..., w_{L-1}, b_{L-1}, out_ref).
    Weights are bf16 (MXU-native); accumulation and bias-add are f32;
    inter-layer activations are carried in bf16.
    """
    o_ref = refs[-1]
    wb = refs[:-1]
    h = x_ref[...].astype(jnp.bfloat16)          # in-kernel cast, no wrapper copy
    for i in range(num_layers):
        w = wb[2 * i][...]                       # bf16 (K_i, Np_i), VMEM-resident
        b = wb[2 * i + 1][...]                   # f32  (1,  Np_i), VMEM-resident
        y = jnp.dot(h, w, preferred_element_type=jnp.float32) + b
        if i < num_layers - 1:
            h = jnp.maximum(y, 0.0).astype(jnp.bfloat16)   # bf16 carry
        else:
            h = y
    o_ref[...] = h.astype(o_ref.dtype)           # bf16 lane-dense store


def _weight_spec(shape):
    """Constant-index, VMEM-resident block. Single-buffered: it is never
    re-DMA'd across the M grid, so the default second buffer is pure waste."""
    try:
        return pl.BlockSpec(shape, lambda i: (0, 0), pipeline_mode=pl.Buffered(1))
    except TypeError:  # very old jax without pipeline_mode: default buffering
        return pl.BlockSpec(shape, lambda i: (0, 0))


def _fused_mlp_pallas(x2d, weights_pad, biases_pad, tm):
    """x2d: (M_pad, K) float; weights_pad[i]: (K_i, Np_i) bf16;
    biases_pad[i]: (1, Np_i) f32.  Returns (M_pad, Np_last) bf16."""
    m_pad, k = x2d.shape
    num_layers = len(weights_pad)
    np_last = weights_pad[-1].shape[1]

    # Pipelined x row-tile; full-K block is legal even if K isn't 128-aligned.
    in_specs = [pl.BlockSpec((tm, k), lambda i: (i, 0))]
    flat_wb = []
    for w, b in zip(weights_pad, biases_pad):
        in_specs.append(_weight_spec(w.shape))
        in_specs.append(_weight_spec(b.shape))
        flat_wb += [w, b]

    # NOTE: this design keeps every layer's weights VMEM-resident.  When
    # sum(weight bytes) approaches the scoped VMEM limit (~16-24 MiB, i.e.
    # hidden_dim >~ 2k, earliest on v7x's 64 MiB VMEM), switch to tiling N
    # (extra "parallel" grid axis) or K ("arbitrary" axis + f32 accumulator).
    # TODO(synk): N/K-tiled fallback for very large hidden dims.
    wb_bytes = (sum(w.size * w.dtype.itemsize for w in weights_pad)
                + sum(b.size * b.dtype.itemsize for b in biases_pad))
    max_np = max(w.shape[1] for w in weights_pad)
    work_bytes = (2 * tm * k * x2d.dtype.itemsize   # double-buffered x tile
                  + 2 * tm * np_last * 2            # double-buffered bf16 out tile
                  + wb_bytes                        # single-buffered weights/biases
                  + 2 * tm * max_np * 4)            # f32 intermediates / spill headroom
    vmem_limit = int(min(max(2 * work_bytes, 32 << 20), 48 << 20))

    flops = 2 * m_pad * sum(w.shape[0] * w.shape[1] for w in weights_pad)
    bytes_accessed = (x2d.size * x2d.dtype.itemsize + wb_bytes
                      + m_pad * np_last * 2)

    kernel = functools.partial(_mlp_fused_kernel, num_layers=num_layers)
    return pl.pallas_call(
        kernel,
        out_shape=jax.ShapeDtypeStruct((m_pad, np_last), jnp.bfloat16),
        grid_spec=pltpu.PrefetchScalarGridSpec(
            num_scalar_prefetch=0,
            grid=(m_pad // tm,),
            in_specs=in_specs,
            out_specs=pl.BlockSpec((tm, np_last), lambda i: (i, 0)),
        ),
        compiler_params=pltpu.CompilerParams(
            dimension_semantics=("parallel",),       # v7x: shard M over both TCs
            vmem_limit_bytes=vmem_limit),
        cost_estimate=pl.CostEstimate(
            flops=flops, transcendentals=0, bytes_accessed=bytes_accessed),
    )(x2d, *flat_wb)


def _choose_row_tile(m):
    """Row-tile selection (static shapes, trace time).

    * cap _ROW_TILE_CAP rows (fits all generations' VMEM at small feature dims)
    * >=2 grid steps once M is non-trivial so v7x's two TensorCores both work
    * tm ~= ceil(m / n_tiles), rounded to 16 (bf16 sublane packing), so the
      ragged-M padding waste is bounded instead of up to tm-1 rows.
    """
    m_eff = max(m, _SUBLANE_BF16)
    min_tiles = 2 if m_eff > 2 * _SUBLANE_BF16 else 1
    n_tiles = max(_cdiv(m_eff, _ROW_TILE_CAP), min_tiles)
    tm = _round_up(_cdiv(m_eff, n_tiles), _SUBLANE_BF16)
    m_pad = _round_up(m_eff, tm)
    return tm, m_pad


@functools.partial(jax.jit, static_argnames=("out_dim",))
def _mlp_forward(x, weights_pad, biases_pad, out_dim):
    orig_shape = x.shape
    k = orig_shape[-1]
    m = 1
    for d in orig_shape[:-1]:
        m *= d

    x2d = x.reshape(m, k)
    tm, m_pad = _choose_row_tile(m)
    if m_pad != m:                       # only pad M, and only when ragged
        x2d = jnp.pad(x2d, ((0, m_pad - m), (0, 0)))

    y_pad = _fused_mlp_pallas(x2d, tuple(weights_pad), tuple(biases_pad), tm)
    y = y_pad[:m, :out_dim].astype(jnp.float32)   # cheap: out_dim lanes only
    return y.reshape(*orig_shape[:-1], out_dim)


class MLP:
    """JAX/Pallas port of the DETR-style MLP: the whole Linear(+ReLU) stack is
    one fused Pallas kernel with VMEM-resident bf16 weights and 128-lane-padded
    output features."""

    def __init__(self, input_dim, hidden_dim, output_dim, num_layers, key):
        self.num_layers = num_layers
        self.output_dim = output_dim
        h = [hidden_dim] * (num_layers - 1)
        dims = list(zip([input_dim] + h, h + [output_dim]))
        self.params = []
        for (n, k) in dims:
            kw, kb, key = jax.random.split(key, 3)
            bound = 1.0 / (n ** 0.5)  # nn.Linear default: U(-1/sqrt(in), 1/sqrt(in))
            w = jax.random.uniform(kw, (n, k), jnp.float32, -bound, bound)  # (in, out)
            b = jax.random.uniform(kb, (k,), jnp.float32, -bound, bound)
            self.params.append((w, b))

        # Kernel layouts: output (N) lanes 128-padded everywhere; input (K) of
        # the FIRST layer kept unpadded so x streams in un-copied with a
        # full-K block; K of later layers padded to match the previous layer's
        # padded N.  Zero padding is exact through bias-add and ReLU.
        weights_pad, biases_pad = [], []
        for li, (w, b) in enumerate(self.params):
            k_in, n_out = w.shape
            kp = k_in if li == 0 else _round_up(k_in, _LANE)
            np_ = _round_up(n_out, _LANE)
            wp = jnp.zeros((kp, np_), jnp.float32).at[:k_in, :n_out].set(w)
            bp = jnp.zeros((1, np_), jnp.float32).at[0, :n_out].set(b)
            weights_pad.append(wp.astype(jnp.bfloat16))
            biases_pad.append(bp)
        self.weights_pad = tuple(weights_pad)
        self.biases_pad = tuple(biases_pad)

    def __call__(self, x):
        return _mlp_forward(x, self.weights_pad, self.biases_pad,
                            out_dim=self.output_dim)


def _reference_mlp(x, params, num_layers):
    """Pure-JAX reference mirroring the kernel math: bf16 matmul operands,
    f32 accumulation, bf16 inter-layer carry, final output rounded to bf16."""
    h = x.reshape(-1, x.shape[-1]).astype(jnp.bfloat16)
    y = None
    for i, (w, b) in enumerate(params):
        y = jnp.dot(h, w.astype(jnp.bfloat16),
                    preferred_element_type=jnp.float32) + b
        if i < num_layers - 1:
            h = jnp.maximum(y, 0.0).astype(jnp.bfloat16)
    out = y.astype(jnp.bfloat16).astype(jnp.float32)
    return out.reshape(*x.shape[:-1], out.shape[-1])


if __name__ == "__main__":
    key = jax.random.PRNGKey(0)
    k_in, k_model = jax.random.split(key)

    # Small shapes consistent with the module's forward (x: (..., input_dim)).
    batch, seq, input_dim, hidden_dim, output_dim, num_layers = 2, 8, 32, 32, 4, 3
    x = jax.random.normal(k_in, (batch, seq, input_dim), jnp.float32)

    mlp = MLP(input_dim, hidden_dim, output_dim, num_layers, k_model)
    out = jax.block_until_ready(mlp(x))

    ref = _reference_mlp(x, mlp.params, num_layers)
    assert out.shape == (batch, seq, output_dim), out.shape
    max_err = float(jnp.max(jnp.abs(out - ref)))
    assert jnp.allclose(out, ref, atol=2e-2, rtol=2e-2), (
        "mismatch vs reference, max abs err = %g" % max_err)

    print("KERNEL_OK")
</pallas_src>

<mosaic_0001>
module attributes {stable_mosaic.version = 11 : i64} {
  func.func @_mlp_fused_kernel(%arg0: i32, %arg1: memref<16x32xf32, #tpu.memory_space<vmem>>, %arg2: memref<32x128xbf16, #tpu.memory_space<vmem>>, %arg3: memref<1x128xf32, #tpu.memory_space<vmem>>, %arg4: memref<128x128xbf16, #tpu.memory_space<vmem>>, %arg5: memref<1x128xf32, #tpu.memory_space<vmem>>, %arg6: memref<128x128xbf16, #tpu.memory_space<vmem>>, %arg7: memref<1x128xf32, #tpu.memory_space<vmem>>, %arg8: memref<16x128xbf16, #tpu.memory_space<vmem>>) attributes {dimension_semantics = [#tpu.dimension_semantics<parallel>], iteration_bounds = array<i64: 1>, scalar_prefetch = 0 : i64, scratch_operands = 0 : i64, tpu.core_type = #tpu.core_type<tc>, window_params = [{transform_indices = @transform_0, window_bounds = array<i64: 16, 32>}, {pipeline_mode = #tpu.pipeline_mode<synchronous>, transform_indices = @transform_1, window_bounds = array<i64: 32, 128>}, {pipeline_mode = #tpu.pipeline_mode<synchronous>, transform_indices = @transform_2, window_bounds = array<i64: 1, 128>}, {pipeline_mode = #tpu.pipeline_mode<synchronous>, transform_indices = @transform_3, window_bounds = array<i64: 128, 128>}, {pipeline_mode = #tpu.pipeline_mode<synchronous>, transform_indices = @transform_4, window_bounds = array<i64: 1, 128>}, {pipeline_mode = #tpu.pipeline_mode<synchronous>, transform_indices = @transform_5, window_bounds = array<i64: 128, 128>}, {pipeline_mode = #tpu.pipeline_mode<synchronous>, transform_indices = @transform_6, window_bounds = array<i64: 1, 128>}, {transform_indices = @transform_7, window_bounds = array<i64: 16, 128>}]} {
    %c0 = arith.constant 0 : index
    %c0_0 = arith.constant 0 : index
    %0 = vector.load %arg1[%c0, %c0_0] : memref<16x32xf32, #tpu.memory_space<vmem>>, vector<16x32xf32>
    %1 = arith.truncf %0 : vector<16x32xf32> to vector<16x32xbf16>
    %c0_1 = arith.constant 0 : index
    %c0_2 = arith.constant 0 : index
    %2 = vector.load %arg2[%c0_1, %c0_2] : memref<32x128xbf16, #tpu.memory_space<vmem>>, vector<32x128xbf16>
    %c0_3 = arith.constant 0 : index
    %c0_4 = arith.constant 0 : index
    %3 = vector.load %arg3[%c0_3, %c0_4] : memref<1x128xf32, #tpu.memory_space<vmem>>, vector<1x128xf32>
    %cst = arith.constant dense<0.000000e+00> : vector<16x128xf32>
    %4 = tpu.matmul %1, %2, %cst {dimension_numbers = #tpu.dot_dimension_numbers<[1], [0], [0], [1], [0, 0, 1, 1], [], []>} : vector<16x32xbf16>, vector<32x128xbf16>, vector<16x128xf32> -> vector<16x128xf32>
    %5 = vector.broadcast %3 : vector<1x128xf32> to vector<16x128xf32>
    %6 = arith.addf %4, %5 : vector<16x128xf32>
    %cst_5 = arith.constant 0.000000e+00 : f32
    %7 = vector.broadcast %cst_5 : f32 to vector<16x128xf32>
    %8 = arith.maximumf %6, %7 : vector<16x128xf32>
    %9 = arith.truncf %8 : vector<16x128xf32> to vector<16x128xbf16>
    %c0_6 = arith.constant 0 : index
    %c0_7 = arith.constant 0 : index
    %10 = vector.load %arg4[%c0_6, %c0_7] : memref<128x128xbf16, #tpu.memory_space<vmem>>, vector<128x128xbf16>
    %c0_8 = arith.constant 0 : index
    %c0_9 = arith.constant 0 : index
    %11 = vector.load %arg5[%c0_8, %c0_9] : memref<1x128xf32, #tpu.memory_space<vmem>>, vector<1x128xf32>
    %cst_10 = arith.constant dense<0.000000e+00> : vector<16x128xf32>
    %12 = tpu.matmul %9, %10, %cst_10 {dimension_numbers = #tpu.dot_dimension_numbers<[1], [0], [0], [1], [0, 0, 1, 1], [], []>} : vector<16x128xbf16>, vector<128x128xbf16>, vector<16x128xf32> -> vector<16x128xf32>
    %13 = vector.broadcast %11 : vector<1x128xf32> to vector<16x128xf32>
    %14 = arith.addf %12, %13 : vector<16x128xf32>
    %cst_11 = arith.constant 0.000000e+00 : f32
    %15 = vector.broadcast %cst_11 : f32 to vector<16x128xf32>
    %16 = arith.maximumf %14, %15 : vector<16x128xf32>
    %17 = arith.truncf %16 : vector<16x128xf32> to vector<16x128xbf16>
    %c0_12 = arith.constant 0 : index
    %c0_13 = arith.constant 0 : index
    %18 = vector.load %arg6[%c0_12, %c0_13] : memref<128x128xbf16, #tpu.memory_space<vmem>>, vector<128x128xbf16>
    %c0_14 = arith.constant 0 : index
    %c0_15 = arith.constant 0 : index
    %19 = vector.load %arg7[%c0_14, %c0_15] : memref<1x128xf32, #tpu.memory_space<vmem>>, vector<1x128xf32>
    %cst_16 = arith.constant dense<0.000000e+00> : vector<16x128xf32>
    %20 = tpu.matmul %17, %18, %cst_16 {dimension_numbers = #tpu.dot_dimension_numbers<[1], [0], [0], [1], [0, 0, 1, 1], [], []>} : vector<16x128xbf16>, vector<128x128xbf16>, vector<16x128xf32> -> vector<16x128xf32>
    %21 = vector.broadcast %19 : vector<1x128xf32> to vector<16x128xf32>
    %22 = arith.addf %20, %21 : vector<16x128xf32>
    %23 = arith.truncf %22 : vector<16x128xf32> to vector<16x128xbf16>
    %c0_17 = arith.constant 0 : index
    %c0_18 = arith.constant 0 : index
    %24 = vector.load %arg8[%c0_17, %c0_18] : memref<16x128xbf16, #tpu.memory_space<vmem>>, vector<16x128xbf16>
    tpu.vector_store %arg8[%c0_17, %c0_18], %23 {strides = array<i32>} : memref<16x128xbf16, #tpu.memory_space<vmem>>, vector<16x128xbf16>,
    return
  }
  func.func @transform_0(%arg0: i32) -> (i32, i32) {
    %c0_i32 = arith.constant 0 : i32
    %c0_i32_0 = arith.constant 0 : i32
    return %arg0, %c0_i32 : i32, i32
  }
  func.func @transform_1(%arg0: i32) -> (i32, i32) {
    %c0_i32 = arith.constant 0 : i32
    %c0_i32_0 = arith.constant 0 : i32
    %c0_i32_1 = arith.constant 0 : i32
    return %c0_i32, %c0_i32_0 : i32, i32
  }
  func.func @transform_2(%arg0: i32) -> (i32, i32) {
    %c0_i32 = arith.constant 0 : i32
    %c0_i32_0 = arith.constant 0 : i32
    %c0_i32_1 = arith.constant 0 : i32
    return %c0_i32, %c0_i32_0 : i32, i32
  }
  func.func @transform_3(%arg0: i32) -> (i32, i32) {
    %c0_i32 = arith.constant 0 : i32
    %c0_i32_0 = arith.constant 0 : i32
    %c0_i32_1 = arith.constant 0 : i32
    return %c0_i32, %c0_i32_0 : i32, i32
  }
  func.func @transform_4(%arg0: i32) -> (i32, i32) {
    %c0_i32 = arith.constant 0 : i32
    %c0_i32_0 = arith.constant 0 : i32
    %c0_i32_1 = arith.constant 0 : i32
    return %c0_i32, %c0_i32_0 : i32, i32
  }
  func.func @transform_5(%arg0: i32) -> (i32, i32) {
    %c0_i32 = arith.constant 0 : i32
    %c0_i32_0 = arith.constant 0 : i32
    %c0_i32_1 = arith.constant 0 : i32
    return %c0_i32, %c0_i32_0 : i32, i32
  }
  func.func @transform_6(%arg0: i32) -> (i32, i32) {
    %c0_i32 = arith.constant 0 : i32
    %c0_i32_0 = arith.constant 0 : i32
    %c0_i32_1 = arith.constant 0 : i32
    return %c0_i32, %c0_i32_0 : i32, i32
  }
  func.func @transform_7(%arg0: i32) -> (i32, i32) {
    %c0_i32 = arith.constant 0 : i32
    %c0_i32_0 = arith.constant 0 : i32
    return %arg0, %c0_i32 : i32, i32
  }
}

</mosaic_0001>

<llo_original>
// kernel: _mlp_forward.1
$region0: #{_mlp_forward.1}
  #allocation0 [shape = 'u32[]', space=smem, size = 0x4, offset = 0x4, fixed_abs, tag = 'smem constant byte address 0x4 - core index']
  #allocation1 [shape = 'u32[144,128]{1,0:T(1,128)}', space=vmem, size = 0x12000, scoped, tag = 'internal scratch']
  %s0 = inlined_call_operand.hbm [shape: f32[16,32], index: 0, kind: input, shape index: {}]
  %s1 = inlined_call_operand.hbm [shape: bf16[32,128], index: 1, kind: input, shape index: {}]
  %s2 = inlined_call_operand.vmem [shape: f32[1,128], index: 2, kind: input, shape index: {}]
  %s3 = inlined_call_operand.hbm [shape: bf16[128,128], index: 3, kind: input, shape index: {}]
  %s4 = inlined_call_operand.vmem [shape: f32[1,128], index: 4, kind: input, shape index: {}]
  %s5 = inlined_call_operand.hbm [shape: bf16[128,128], index: 5, kind: input, shape index: {}]
  %s6 = inlined_call_operand.vmem [shape: f32[1,128], index: 6, kind: input, shape index: {}]
  %s7 = inlined_call_operand.vmem [shape: bf16[16,128], index: 7, kind: output, shape index: {}]
  %s8 = sld [smem:[#allocation0]]
  $region54: #{_mlp_forward.1} parent=0
    _
  %s10 = ssub.s32 1, %s8
  %s11 = scalar_select 0, %s10, %s8
  $region1: #{_mlp_forward.1} parent=0
    #allocation2 [shape = 'u8[8192]{0}', space=vmem, size = 0x2000, scoped, tag = 'input window, operand 0, single buffered']
    #allocation3 [shape = 's32[1]{0}', space=sflag, size = 0x4, scoped, tag = 'scoped memory for _mlp_forward.1']
    #allocation4 [shape = 'u8[8192]{0}', space=vmem, size = 0x2000, scoped, tag = 'input window, operand 1, single buffered']
    #allocation5 [shape = 's32[1]{0}', space=sflag, size = 0x4, scoped, tag = 'scoped memory for _mlp_forward.1']
    #allocation6 [shape = 'u8[32768]{0}', space=vmem, size = 0x8000, scoped, tag = 'input window, operand 3, single buffered']
    #allocation7 [shape = 'u8[32768]{0}', space=vmem, size = 0x8000, scoped, tag = 'input window, operand 5, single buffered']
    #allocation8 [shape = 's32[1]{0}', space=sflag, size = 0x4, scoped, tag = 'scoped memory for _mlp_forward.1']
    %12 = vsyncpa [#allocation3], 0
    %13 = vsyncpa [#allocation5], 0
    %14 = vsyncpa [#allocation8], 0
    // Predicated region
    $region2: #{_mlp_forward.1} parent=1 // pred_check
      _
    $region3: #{_mlp_forward.1} parent=1 // pred_check_branch
      %16 = sbr.rel (0) target = $region5
    $region4: #{_mlp_forward.1} parent=1 // pred_region
      %s18 = ssub.s32 256, 256
      %19 = vsyncadd [#allocation3], %s18
      %s20 = sshll.u32 [#allocation2], 4
      %s21 = int_to_ptr.vmem [resolvable:$true] %s20
      %26 = dma.hbm_to_vmem [thread:$0]  %s0, 256, %s21, [#allocation3], 128, 128, 8
    $region5: #{_mlp_forward.1} parent=1 // pred_fallthru
      _
    // Predicated region
    $region6: #{_mlp_forward.1} parent=1 // pred_check
      _
    $region7: #{_mlp_forward.1} parent=1 // pred_check_branch
      %28 = sbr.rel (0) target = $region9
    $region8: #{_mlp_forward.1} parent=1 // pred_region
      %s30 = ssub.s32 256, 256
      %31 = vsyncadd [#allocation5], %s30
      %s32 = sshll.u32 [#allocation4], 4
      %s33 = int_to_ptr.vmem [resolvable:$true] %s32
      %38 = dma.hbm_to_vmem [thread:$0]  %s1, 256, %s33, [#allocation5], 64, 64, 4
    $region9: #{_mlp_forward.1} parent=1 // pred_fallthru
      _
    // Predicated region
    $region10: #{_mlp_forward.1} parent=1 // pred_check
      _
    $region11: #{_mlp_forward.1} parent=1 // pred_check_branch
      %40 = sbr.rel (0) target = $region13
    $region12: #{_mlp_forward.1} parent=1 // pred_region
      _
    $region13: #{_mlp_forward.1} parent=1 // pred_fallthru
      _
    // Predicated region
    $region14: #{_mlp_forward.1} parent=1 // pred_check
      _
    $region15: #{_mlp_forward.1} parent=1 // pred_check_branch
      %42 = sbr.rel (0) target = $region17
    $region16: #{_mlp_forward.1} parent=1 // pred_region
      %s44 = ssub.s32 1024, 1024
      %45 = vsyncadd [#allocation5], %s44
      %s46 = sshll.u32 [#allocation6], 4
      %s47 = int_to_ptr.vmem [resolvable:$true] %s46
      %52 = dma.hbm_to_vmem [thread:$0]  %s3, 1024, %s47, [#allocation5], 64, 64, 4
    $region17: #{_mlp_forward.1} parent=1 // pred_fallthru
      _
    // Predicated region
    $region18: #{_mlp_forward.1} parent=1 // pred_check
      _
    $region19: #{_mlp_forward.1} parent=1 // pred_check_branch
      %54 = sbr.rel (0) target = $region21
    $region20: #{_mlp_forward.1} parent=1 // pred_region
      _
    $region21: #{_mlp_forward.1} parent=1 // pred_fallthru
      _
    // Predicated region
    $region22: #{_mlp_forward.1} parent=1 // pred_check
      _
    $region23: #{_mlp_forward.1} parent=1 // pred_check_branch
      %56 = sbr.rel (0) target = $region25
    $region24: #{_mlp_forward.1} parent=1 // pred_region
      %s58 = ssub.s32 1024, 1024
      %59 = vsyncadd [#allocation8], %s58
      %s60 = sshll.u32 [#allocation7], 4
      %s61 = int_to_ptr.vmem [resolvable:$true] %s60
      %66 = dma.hbm_to_vmem [thread:$0]  %s5, 1024, %s61, [#allocation8], 64, 64, 4
    $region25: #{_mlp_forward.1} parent=1 // pred_fallthru
      _
    // Predicated region
    $region26: #{_mlp_forward.1} parent=1 // pred_check
      _
    $region27: #{_mlp_forward.1} parent=1 // pred_check_branch
      %68 = sbr.rel (0) target = $region29
    $region28: #{_mlp_forward.1} parent=1 // pred_region
      _
    $region29: #{_mlp_forward.1} parent=1 // pred_fallthru
      _
    // Predicated region
    $region30: #{_mlp_forward.1} parent=1 // pred_check
      _
    $region31: #{_mlp_forward.1} parent=1 // pred_check_branch
      %70 = sbr.rel (0) target = $region33
    $region32: #{_mlp_forward.1} parent=1 // pred_region
      %71 = dma.done [#allocation3], 256
    $region33: #{_mlp_forward.1} parent=1 // pred_fallthru
      _
    // Predicated region
    $region34: #{_mlp_forward.1} parent=1 // pred_check
      _
    $region35: #{_mlp_forward.1} parent=1 // pred_check_branch
      %73 = sbr.rel (0) target = $region37
    $region36: #{_mlp_forward.1} parent=1 // pred_region
      %74 = dma.done [#allocation5], 256
    $region37: #{_mlp_forward.1} parent=1 // pred_fallthru
      _
    // Predicated region
    $region38: #{_mlp_forward.1} parent=1 // pred_check
      _
    $region39: #{_mlp_forward.1} parent=1 // pred_check_branch
      %76 = sbr.rel (0) target = $region41
    $region40: #{_mlp_forward.1} parent=1 // pred_region
      %77 = dma.done [#allocation5], 1024
    $region41: #{_mlp_forward.1} parent=1 // pred_fallthru
      _
    // Predicated region
    $region42: #{_mlp_forward.1} parent=1 // pred_check
      _
    $region43: #{_mlp_forward.1} parent=1 // pred_check_branch
      %79 = sbr.rel (0) target = $region45
    $region44: #{_mlp_forward.1} parent=1 // pred_region
      %80 = dma.done [#allocation8], 1024
    $region45: #{_mlp_forward.1} parent=1 // pred_fallthru
      _
    %v82 = vld [vmem:[#allocation2] sm:$0xff]
    %v83 = vld [vmem:[#allocation2 + $0x8] sm:$0xff]
    %v84 = vpack.c.bf16 %v83, %v82
    %v85 = vld [vmem:[#allocation4] sm:$0xf]
    %v86 = vld [vmem:[#allocation4 + $0x4] sm:$0xf]
    %v87 = vld [vmem:[#allocation4 + $0x8] sm:$0xf]
    %v88 = vld [vmem:[#allocation4 + $0xc] sm:$0xf]
    %v89 = vld [vmem:[%s2] sm:$0x1]
    %v91 = vlaneseq
    %v92 = vshrl.u32 %v91, 7
    %v93 = vsub.s32 0, %v92
    %v94 = vrot.slane %v89, %v93
    %v100 = vunpack.c.l.b16 %v85
    %v101 = vunpack.c.l.b16 %v86
    %v102 = vunpack.c.l.b16 %v87
    %v103 = vunpack.c.l.b16 %v88
    %v104 = vpack.c.b16 %v101, %v100
    %v105 = vpack.c.b16 %v103, %v102
    %vm108 = vcmask 261120
    %v110 = vsel %vm108, %v84, 0
    %112 = vmatprep.subr.bf16.mxu0 0
    %113 = vmatpush1.bf16.msra.mxu0 %v104
    %114 = vmatprep.subr.bf16.mxu0 0
    %115 = vmatpush1.bf16.msra.mxu0 %v105
    %116 = vmatprep.subr.bf16.mxu0 0
    %117 = vmatpush1.bf16.msra.mxu0 0
    %118 = vmatprep.subr.bf16.mxu0 0
    %119 = vmatpush1.bf16.msra.mxu0 0
    %120 = vmatprep.subr.bf16.mxu0 0
    %121 = vmatpush1.bf16.msra.mxu0 0
    %122 = vmatprep.subr.bf16.mxu0 0
    %123 = vmatpush1.bf16.msra.mxu0 0
    %124 = vmatprep.subr.bf16.mxu0 0
    %125 = vmatpush1.bf16.msra.mxu0 0
    %126 = vmatprep.subr.bf16.mxu0 0
    %127 = vmatpush1.bf16.msra.mxu0 0
    %128 = vmatprep.subr.bf16.mxu0 0
    %129 = vmatpush1.bf16.msra.mxu0 0
    %130 = vmatprep.subr.bf16.mxu0 0
    %131 = vmatpush1.bf16.msra.mxu0 0
    %132 = vmatprep.subr.bf16.mxu0 0
    %133 = vmatpush1.bf16.msra.mxu0 0
    %134 = vmatprep.subr.bf16.mxu0 0
    %135 = vmatpush1.bf16.msra.mxu0 0
    %136 = vmatprep.subr.bf16.mxu0 0
    %137 = vmatpush1.bf16.msra.mxu0 0
    %138 = vmatprep.subr.bf16.mxu0 0
    %139 = vmatpush1.bf16.msra.mxu0 0
    %140 = vmatprep.subr.bf16.mxu0 0
    %141 = vmatpush1.bf16.msra.mxu0 0
    %142 = vmatprep.subr.bf16.mxu0 0
    %143 = vmatpush1.bf16.msra.mxu0 0
    %144 = vmatprep.mubr.bf16.mxu0 0
    %145 = vmatmul.mubr.bf16.gmra.mrb[0].mxu0 %v110
    %v146 = vpop.f32.mrb[0].mxu0
    %v147 = vadd.f32 %v94, %v146
    %v148 = vpop.f32.mrb[0].mxu0
    %v149 = vpop.f32.mrb[0].mxu0
    %v150 = vadd.f32 %v94, %v149
    %v151 = vpop.f32.mrb[0].mxu0
    %152 = vdwg.mxu0
    %v153 = vmax.f32 %v147, 0.0
    %v154 = vmax.f32 %v150, 0.0
    %v155 = vpack.c.bf16 %v154, %v153
    %v156 = vld [vmem:[#allocation6] sm:$0xf]
    %v157 = vld [vmem:[#allocation6 + $0x4] sm:$0xf]
    %v158 = vld [vmem:[#allocation6 + $0x8] sm:$0xf]
    %v159 = vld [vmem:[#allocation6 + $0xc] sm:$0xf]
    %v160 = vld [vmem:[#allocation6 + $0x10] sm:$0xf]
    %v161 = vld [vmem:[#allocation6 + $0x14] sm:$0xf]
    %v162 = vld [vmem:[#allocation6 + $0x18] sm:$0xf]
    %v163 = vld [vmem:[#allocation6 + $0x1c] sm:$0xf]
    %v164 = vld [vmem:[#allocation6 + $0x20] sm:$0xf]
    %v165 = vld [vmem:[#allocation6 + $0x24] sm:$0xf]
    %v166 = vld [vmem:[#allocation6 + $0x28] sm:$0xf]
    %v167 = vld [vmem:[#allocation6 + $0x2c] sm:$0xf]
    %v168 = vld [vmem:[#allocation6 + $0x30] sm:$0xf]
    %v169 = vld [vmem:[#allocation6 + $0x34] sm:$0xf]
    %v170 = vld [vmem:[#allocation6 + $0x38] sm:$0xf]
    %v171 = vld [vmem:[#allocation6 + $0x3c] sm:$0xf]
    %v172 = vld [vmem:[%s4] sm:$0x1]
    %v174 = vlaneseq
    %v175 = vshrl.u32 %v174, 7
    %v176 = vsub.s32 0, %v175
    %v177 = vrot.slane %v172, %v176
    %v195 = vunpack.c.l.b16 %v156
    %v196 = vunpack.c.l.b16 %v157
    %v197 = vunpack.c.l.b16 %v158
    %v198 = vunpack.c.l.b16 %v159
    %v199 = vunpack.c.l.b16 %v160
    %v200 = vunpack.c.l.b16 %v161
    %v201 = vunpack.c.l.b16 %v162
    %v202 = vunpack.c.l.b16 %v163
    %v203 = vunpack.c.l.b16 %v164
    %v204 = vunpack.c.l.b16 %v165
    %v205 = vunpack.c.l.b16 %v166
    %v206 = vunpack.c.l.b16 %v167
    %v207 = vunpack.c.l.b16 %v168
    %v208 = vunpack.c.l.b16 %v169
    %v209 = vunpack.c.l.b16 %v170
    %v210 = vunpack.c.l.b16 %v171
    %v211 = vpack.c.b16 %v196, %v195
    %v212 = vpack.c.b16 %v198, %v197
    %v213 = vpack.c.b16 %v200, %v199
    %v214 = vpack.c.b16 %v202, %v201
    %v215 = vpack.c.b16 %v204, %v203
    %v216 = vpack.c.b16 %v206, %v205
    %v217 = vpack.c.b16 %v208, %v207
    %v218 = vpack.c.b16 %v210, %v209
    %227 = vmatprep.subr.bf16.mxu0 0
    %228 = vmatpush1.bf16.msra.mxu0 %v211
    %229 = vmatprep.subr.bf16.mxu0 0
    %230 = vmatpush1.bf16.msra.mxu0 %v212
    %231 = vmatprep.subr.bf16.mxu0 0
    %232 = vmatpush1.bf16.msra.mxu0 %v213
    %233 = vmatprep.subr.bf16.mxu0 0
    %234 = vmatpush1.bf16.msra.mxu0 %v214
    %235 = vmatprep.subr.bf16.mxu0 0
    %236 = vmatpush1.bf16.msra.mxu0 %v215
    %237 = vmatprep.subr.bf16.mxu0 0
    %238 = vmatpush1.bf16.msra.mxu0 %v216
    %239 = vmatprep.subr.bf16.mxu0 0
    %240 = vmatpush1.bf16.msra.mxu0 %v217
    %241 = vmatprep.subr.bf16.mxu0 0
    %242 = vmatpush1.bf16.msra.mxu0 %v218
    %243 = vmatprep.subr.bf16.mxu0 0
    %244 = vmatpush1.bf16.msra.mxu0 0
    %245 = vmatprep.subr.bf16.mxu0 0
    %246 = vmatpush1.bf16.msra.mxu0 0
    %247 = vmatprep.subr.bf16.mxu0 0
    %248 = vmatpush1.bf16.msra.mxu0 0
    %249 = vmatprep.subr.bf16.mxu0 0
    %250 = vmatpush1.bf16.msra.mxu0 0
    %251 = vmatprep.subr.bf16.mxu0 0
    %252 = vmatpush1.bf16.msra.mxu0 0
    %253 = vmatprep.subr.bf16.mxu0 0
    %254 = vmatpush1.bf16.msra.mxu0 0
    %255 = vmatprep.subr.bf16.mxu0 0
    %256 = vmatpush1.bf16.msra.mxu0 0
    %257 = vmatprep.subr.bf16.mxu0 0
    %258 = vmatpush1.bf16.msra.mxu0 0
    %259 = vmatprep.mubr.bf16.mxu0 0
    %260 = vmatmul.mubr.bf16.gmra.mrb[0].mxu0 %v155
    %v261 = vpop.f32.mrb[0].mxu0
    %v262 = vadd.f32 %v177, %v261
    %v263 = vpop.f32.mrb[0].mxu0
    %v264 = vpop.f32.mrb[0].mxu0
    %v265 = vadd.f32 %v177, %v264
    %v266 = vpop.f32.mrb[0].mxu0
    %267 = vdwg.mxu0
    %v268 = vmax.f32 %v262, 0.0
    %v269 = vmax.f32 %v265, 0.0
    %v270 = vpack.c.bf16 %v269, %v268
    %v271 = vld [vmem:[#allocation7] sm:$0xf]
    %v272 = vld [vmem:[#allocation7 + $0x4] sm:$0xf]
    %v273 = vld [vmem:[#allocation7 + $0x8] sm:$0xf]
    %v274 = vld [vmem:[#allocation7 + $0xc] sm:$0xf]
    %v275 = vld [vmem:[#allocation7 + $0x10] sm:$0xf]
    %v276 = vld [vmem:[#allocation7 + $0x14] sm:$0xf]
    %v277 = vld [vmem:[#allocation7 + $0x18] sm:$0xf]
    %v278 = vld [vmem:[#allocation7 + $0x1c] sm:$0xf]
    %v279 = vld [vmem:[#allocation7 + $0x20] sm:$0xf]
    %v280 = vld [vmem:[#allocation7 + $0x24] sm:$0xf]
    %v281 = vld [vmem:[#allocation7 + $0x28] sm:$0xf]
    %v282 = vld [vmem:[#allocation7 + $0x2c] sm:$0xf]
    %v283 = vld [vmem:[#allocation7 + $0x30] sm:$0xf]
    %v284 = vld [vmem:[#allocation7 + $0x34] sm:$0xf]
    %v285 = vld [vmem:[#allocation7 + $0x38] sm:$0xf]
    %v286 = vld [vmem:[#allocation7 + $0x3c] sm:$0xf]
    %v287 = vld [vmem:[%s6] sm:$0x1]
    %v289 = vlaneseq
    %v290 = vshrl.u32 %v289, 7
    %v291 = vsub.s32 0, %v290
    %v292 = vrot.slane %v287, %v291
    %v310 = vunpack.c.l.b16 %v271
    %v311 = vunpack.c.l.b16 %v272
    %v312 = vunpack.c.l.b16 %v273
    %v313 = vunpack.c.l.b16 %v274
    %v314 = vunpack.c.l.b16 %v275
    %v315 = vunpack.c.l.b16 %v276
    %v316 = vunpack.c.l.b16 %v277
    %v317 = vunpack.c.l.b16 %v278
    %v318 = vunpack.c.l.b16 %v279
    %v319 = vunpack.c.l.b16 %v280
    %v320 = vunpack.c.l.b16 %v281
    %v321 = vunpack.c.l.b16 %v282
    %v322 = vunpack.c.l.b16 %v283
    %v323 = vunpack.c.l.b16 %v284
    %v324 = vunpack.c.l.b16 %v285
    %v325 = vunpack.c.l.b16 %v286
    %v326 = vpack.c.b16 %v311, %v310
    %v327 = vpack.c.b16 %v313, %v312
    %v328 = vpack.c.b16 %v315, %v314
    %v329 = vpack.c.b16 %v317, %v316
    %v330 = vpack.c.b16 %v319, %v318
    %v331 = vpack.c.b16 %v321, %v320
    %v332 = vpack.c.b16 %v323, %v322
    %v333 = vpack.c.b16 %v325, %v324
    %342 = vmatprep.subr.bf16.mxu0 0
    %343 = vmatpush1.bf16.msra.mxu0 %v326
    %344 = vmatprep.subr.bf16.mxu0 0
    %345 = vmatpush1.bf16.msra.mxu0 %v327
    %346 = vmatprep.subr.bf16.mxu0 0
    %347 = vmatpush1.bf16.msra.mxu0 %v328
    %348 = vmatprep.subr.bf16.mxu0 0
    %349 = vmatpush1.bf16.msra.mxu0 %v329
    %350 = vmatprep.subr.bf16.mxu0 0
    %351 = vmatpush1.bf16.msra.mxu0 %v330
    %352 = vmatprep.subr.bf16.mxu0 0
    %353 = vmatpush1.bf16.msra.mxu0 %v331
    %354 = vmatprep.subr.bf16.mxu0 0
    %355 = vmatpush1.bf16.msra.mxu0 %v332
    %356 = vmatprep.subr.bf16.mxu0 0
    %357 = vmatpush1.bf16.msra.mxu0 %v333
    %358 = vmatprep.subr.bf16.mxu0 0
    %359 = vmatpush1.bf16.msra.mxu0 0
    %360 = vmatprep.subr.bf16.mxu0 0
    %361 = vmatpush1.bf16.msra.mxu0 0
    %362 = vmatprep.subr.bf16.mxu0 0
    %363 = vmatpush1.bf16.msra.mxu0 0
    %364 = vmatprep.subr.bf16.mxu0 0
    %365 = vmatpush1.bf16.msra.mxu0 0
    %366 = vmatprep.subr.bf16.mxu0 0
    %367 = vmatpush1.bf16.msra.mxu0 0
    %368 = vmatprep.subr.bf16.mxu0 0
    %369 = vmatpush1.bf16.msra.mxu0 0
    %370 = vmatprep.subr.bf16.mxu0 0
    %371 = vmatpush1.bf16.msra.mxu0 0
    %372 = vmatprep.subr.bf16.mxu0 0
    %373 = vmatpush1.bf16.msra.mxu0 0
    %374 = vmatprep.mubr.bf16.mxu0 0
    %375 = vmatmul.mubr.bf16.gmra.mrb[0].mxu0 %v270
    %v376 = vpop.f32.mrb[0].mxu0
    %v377 = vadd.f32 %v292, %v376
    %v378 = vpop.f32.mrb[0].mxu0
    %v379 = vpop.f32.mrb[0].mxu0
    %v380 = vadd.f32 %v292, %v379
    %v381 = vpop.f32.mrb[0].mxu0
    %382 = vdwg.mxu0
    %v383 = vpack.c.bf16 %v380, %v377
    %v385 = vunpack.c.l.b16 %v383
    %v386 = vunpack.c.h.b16 %v383
    %v387 = vpack.c.b16 %v385, %v385
    %v388 = vpack.c.b16 %v386, %v386
    %391 = vst [vmem:[%s7] sm:$0xf] %v387
    %392 = vst [vmem:[%s7 + $0x4] sm:$0xf] %v388
    // Predicated region
    $region46: #{_mlp_forward.1} parent=1 // pred_check
      _
    $region47: #{_mlp_forward.1} parent=1 // pred_check_branch
      %394 = sbr.rel (0) target = $region49
    $region48: #{_mlp_forward.1} parent=1 // pred_region
      _
    $region49: #{_mlp_forward.1} parent=1 // pred_fallthru
      _
    // Predicated region
    $region50: #{_mlp_forward.1} parent=1 // pred_check
      _
    $region51: #{_mlp_forward.1} parent=1 // pred_check_branch
      %396 = sbr.rel (0) target = $region53
    $region52: #{_mlp_forward.1} parent=1 // pred_region
      _
    $region53: #{_mlp_forward.1} parent=1 // pred_fallthru
      _
    %397 = vsyncpa [#allocation3], 1
    %398 = vsyncpa [#allocation5], 1
    %399 = vsyncpa [#allocation8], 1

</llo_original>
